<compile_context>
chip_gen: v6e
topology: v6e:2x2x1
jax: 0.10.0
libtpu: 0.0.40
codegen_flags: <defaults>
</compile_context>

<pallas_src>
import functools

import jax
import jax.numpy as jnp
from jax.experimental import pallas as pl
from jax.experimental.pallas import tpu as pltpu

_BN_EPS = 1e-5
_VMEM_LIMIT = 32 * 1024 * 1024  # explicit scoped-VMEM budget (safe on v5e/v6e/v7x)


# ----------------------------------------------------------------------------
# Small helpers
# ----------------------------------------------------------------------------
def _round_up(x, m):
    return ((x + m - 1) // m) * m


def _choose_tm(m):
    """Row-tile: multiple of 8, and >=2 blocks when possible (2 TCs on v7x)."""
    mp = _round_up(m, 8)
    if mp >= 256:
        return 128, _round_up(mp, 128)
    for t in (128, 64, 32, 16, 8):
        if mp % t == 0 and mp // t >= 2:
            return t, mp
    return mp, mp


def _choose_tile(dim, cands):
    """Lane-dense tile (multiple of 128) from `cands` (descending)."""
    dp = _round_up(dim, 128)
    for t in cands:
        if dp % t == 0:
            return t, dp
    t = cands[-1]
    return t, _round_up(dp, t)


def _pad_rows_cols(a, rows, cols):
    return jnp.pad(a, ((0, rows - a.shape[0]), (0, cols - a.shape[1])))


# ----------------------------------------------------------------------------
# Pallas kernel 1: tiled matmul + bias + (residual) + (ReLU), f32 accumulator
# ----------------------------------------------------------------------------
def _matmul_kernel(x_ref, w_ref, b_ref, *rest, relu, has_res):
    if has_res:
        res_ref, o_ref, acc_ref = rest
    else:
        o_ref, acc_ref = rest
    k = pl.program_id(2)

    @pl.when(k == 0)
    def _init():
        acc_ref[...] = jnp.zeros_like(acc_ref)

    acc_ref[...] += jnp.dot(x_ref[...], w_ref[...],
                            preferred_element_type=jnp.float32)

    @pl.when(k == pl.num_programs(2) - 1)
    def _finalize():
        out = acc_ref[...] + b_ref[...]
        if has_res:
            out = out + res_ref[...].astype(jnp.float32)
        if relu:
            out = jnp.maximum(out, 0.0)
        o_ref[...] = out.astype(o_ref.dtype)


def matmul_bias_act(x, w, bias, residual=None, relu=True,
                    out_dtype=jnp.bfloat16):
    """Fused (x @ w) + bias [+ residual] [+ ReLU].

    x: (M, K), w: (K, N) -- cast to bf16 for the MXU.  bias: (N,) f32.
    f32 accumulation + f32 epilogue; result cast to `out_dtype`.
    """
    M, K = x.shape
    K2, N = w.shape
    assert K == K2
    tm, Mp = _choose_tm(M)
    tk, Kp = _choose_tile(K, (512, 384, 256, 128))
    tn, Np = _choose_tile(N, (256, 128))

    xb = _pad_rows_cols(x.astype(jnp.bfloat16), Mp, Kp)
    wb = _pad_rows_cols(w.astype(jnp.bfloat16), Kp, Np)
    bb = jnp.pad(bias.astype(jnp.float32), (0, Np - N)).reshape(1, Np)
    has_res = residual is not None

    in_specs = [
        pl.BlockSpec((tm, tk), lambda i, j, k: (i, k)),
        pl.BlockSpec((tk, tn), lambda i, j, k: (k, j)),
        pl.BlockSpec((1, tn), lambda i, j, k: (0, j)),
    ]
    args = [xb, wb, bb]
    if has_res:
        rb = _pad_rows_cols(residual.astype(jnp.bfloat16), Mp, Np)
        in_specs.append(pl.BlockSpec((tm, tn), lambda i, j, k: (i, j)))
        args.append(rb)

    kernel = functools.partial(_matmul_kernel, relu=relu, has_res=has_res)
    out = pl.pallas_call(
        kernel,
        out_shape=jax.ShapeDtypeStruct((Mp, Np), out_dtype),
        grid_spec=pltpu.PrefetchScalarGridSpec(
            num_scalar_prefetch=0,
            grid=(Mp // tm, Np // tn, Kp // tk),
            in_specs=in_specs,
            out_specs=pl.BlockSpec((tm, tn), lambda i, j, k: (i, j)),
            scratch_shapes=[pltpu.VMEM((tm, tn), jnp.float32)],
        ),
        compiler_params=pltpu.CompilerParams(
            dimension_semantics=("parallel", "parallel", "arbitrary"),
            vmem_limit_bytes=_VMEM_LIMIT),
    )(*args)
    if (Mp, Np) != (M, N):
        out = out[:M, :N]
    return out


# ----------------------------------------------------------------------------
# Pallas kernel 2: fused 3x3 / stride-1 / pad-1 conv + bias + ReLU
# (no HBM im2col: 9 flat-shifted matmuls over a VMEM-resident padded image)
# ----------------------------------------------------------------------------
def _conv3x3_kernel(x_ref, w_ref, b_ref, o_ref, *, wp, rows):
    # x_ref: (flat, C) bf16 -- one spatially padded image, row-major (h, w).
    # A tap (dh, dw) is a flat shift of dh*wp + dw; summing the 9 shifted
    # matmuls gives the stride-1 conv at all `rows` flat output positions
    # (the 2 "wrap" columns per row are garbage, sliced off by the wrapper).
    acc = jnp.zeros((rows, o_ref.shape[-1]), jnp.float32)
    for dh in range(3):
        for dw in range(3):
            off = dh * wp + dw
            acc = acc + jnp.dot(x_ref[off:off + rows, :],
                                w_ref[dh * 3 + dw],
                                preferred_element_type=jnp.float32)
    o_ref[...] = jnp.maximum(acc + b_ref[...], 0.0).astype(o_ref.dtype)


def conv3x3_s1_bn_relu(x_nhwc, w9, bias, out_dtype=jnp.bfloat16):
    """x_nhwc: (N,H,W,C) bf16 (C lane-padded), w9: (9,C,O) (BN scale folded),
    bias: (O,) f32.  Returns (N*H*W, O)."""
    N, H, W, C = x_nhwc.shape
    O = w9.shape[-1]
    Wp = W + 2
    # pad: 1 row top, 2 rows bottom (extra zero row keeps the largest flat
    # shift 2*Wp+2 in-bounds), 1 col left/right.
    xp = jnp.pad(x_nhwc, ((0, 0), (1, 2), (1, 1), (0, 0)))
    flat = (H + 3) * Wp
    xp = xp.reshape(N, flat, C)
    rows = H * Wp
    kernel = functools.partial(_conv3x3_kernel, wp=Wp, rows=rows)
    out = pl.pallas_call(
        kernel,
        out_shape=jax.ShapeDtypeStruct((N, rows, O), out_dtype),
        grid_spec=pltpu.PrefetchScalarGridSpec(
            num_scalar_prefetch=0,
            grid=(N,),
            in_specs=[
                pl.BlockSpec((None, flat, C), lambda n: (n, 0, 0)),
                pl.BlockSpec((9, C, O), lambda n: (0, 0, 0)),
                pl.BlockSpec((1, O), lambda n: (0, 0)),
            ],
            out_specs=pl.BlockSpec((None, rows, O), lambda n: (n, 0, 0)),
        ),
        compiler_params=pltpu.CompilerParams(
            dimension_semantics=("parallel",),
            vmem_limit_bytes=_VMEM_LIMIT),
    )(xp, w9.astype(jnp.bfloat16), bias.astype(jnp.float32).reshape(1, O))
    out = out.reshape(N, H, Wp, O)[:, :, :W, :]
    return out.reshape(N * H * W, O)


# ----------------------------------------------------------------------------
# Glue: BN folding, weight layout conversion, im2col fallback (stride != 1)
# ----------------------------------------------------------------------------
def fold_bn(gamma, beta, mean, var, eps=_BN_EPS):
    scale = gamma / jnp.sqrt(var + eps)
    bias = beta - mean * scale
    return scale, bias


def _w1x1_scaled(w_oihw, scale, in_p, out_p):
    # (O, I, 1, 1) -> (I_p, O_p) with BN scale folded into columns.
    w = jnp.transpose(w_oihw[:, :, 0, 0], (1, 0)) * scale[None, :]
    return _pad_rows_cols(w, in_p, out_p)


def _w3x3_scaled(w_oihw, scale, in_p, out_p):
    # (O, I, 3, 3) -> (9, I_p, O_p), tap-major (dh, dw), BN scale folded in.
    O, I, _, _ = w_oihw.shape
    w = jnp.transpose(w_oihw, (2, 3, 1, 0)).reshape(9, I, O)
    w = w * scale[None, None, :]
    return jnp.pad(w, ((0, 0), (0, in_p - I), (0, out_p - O)))


def _im2col_3x3(x_nhwc, stride):
    """3x3 / pad-1 im2col (only used for stride != 1). (dh, dw, c) ordering."""
    N, H, W, C = x_nhwc.shape
    xp = jnp.pad(x_nhwc, ((0, 0), (1, 1), (1, 1), (0, 0)))
    Ho = (H - 1) // stride + 1
    Wo = (W - 1) // stride + 1
    cols = []
    for dh in range(3):
        for dw in range(3):
            cols.append(xp[:, dh:dh + stride * (Ho - 1) + 1:stride,
                           dw:dw + stride * (Wo - 1) + 1:stride, :])
    return jnp.concatenate(cols, axis=-1), Ho, Wo


# ----------------------------------------------------------------------------
# Bottleneck forward (Pallas)
# ----------------------------------------------------------------------------
def bottleneck_forward(x_nchw, params, stride):
    x = jnp.transpose(x_nchw, (0, 2, 3, 1))              # NHWC, f32
    N, H, W, Cin = x.shape
    planes = params["w1"].shape[0]
    Cout = params["w3"].shape[0]
    has_shortcut_conv = (stride != 1) or (Cin != Cout)

    # lane-dense (multiple-of-128) channel padding, kept end-to-end
    Cin_p = _round_up(Cin, 128)
    Pp = _round_up(planes, 128)
    Op = _round_up(Cout, 128)

    xb = jnp.pad(x, ((0, 0), (0, 0), (0, 0), (0, Cin_p - Cin))
                 ).astype(jnp.bfloat16)

    # conv1 (1x1) + bn1 + relu
    s1, b1 = fold_bn(*params["bn1"])
    w1 = _w1x1_scaled(params["w1"], s1, Cin_p, Pp)
    out1 = matmul_bias_act(xb.reshape(N * H * W, Cin_p), w1,
                           jnp.pad(b1, (0, Pp - planes)), relu=True)

    # conv2 (3x3, stride, pad=1) + bn2 + relu
    s2, b2 = fold_bn(*params["bn2"])
    w2 = _w3x3_scaled(params["w2"], s2, Pp, Pp)
    b2p = jnp.pad(b2, (0, Pp - planes))
    if stride == 1:
        out2 = conv3x3_s1_bn_relu(out1.reshape(N, H, W, Pp), w2, b2p)
        Ho, Wo = H, W
    else:
        # TODO(synk): strided 3x3 conv falls back to an HBM im2col feeding the
        # generic matmul kernel (output is stride^2 smaller so the extra
        # bandwidth is modest); a fused strided-window kernel is not done.
        patches, Ho, Wo = _im2col_3x3(out1.reshape(N, H, W, Pp), stride)
        out2 = matmul_bias_act(patches.reshape(N * Ho * Wo, 9 * Pp),
                               w2.reshape(9 * Pp, Pp), b2p, relu=True)

    M2 = N * Ho * Wo

    # shortcut
    if has_shortcut_conv:
        ssc, bsc = fold_bn(*params["bn_sc"])
        wsc = _w1x1_scaled(params["w_sc"], ssc, Cin_p, Op)
        xs = xb[:, ::stride, ::stride, :].reshape(M2, Cin_p)
        shortcut = matmul_bias_act(xs, wsc, jnp.pad(bsc, (0, Op - Cout)),
                                   relu=False)
    else:
        shortcut = xb.reshape(M2, Cin_p)      # Cin == Cout here -> Cin_p == Op

    # conv3 (1x1) + bn3 + residual add + relu (fully fused)
    s3, b3 = fold_bn(*params["bn3"])
    w3 = _w1x1_scaled(params["w3"], s3, Pp, Op)
    out3 = matmul_bias_act(out2, w3, jnp.pad(b3, (0, Op - Cout)),
                           residual=shortcut, relu=True,
                           out_dtype=jnp.float32)

    out = out3[:, :Cout].reshape(N, Ho, Wo, Cout)
    return jnp.transpose(out, (0, 3, 1, 2))               # back to NCHW


# ----------------------------------------------------------------------------
# Pure-JAX reference (inference-mode BN)
# ----------------------------------------------------------------------------
def _ref_conv(x, w, stride=1, pad=0):
    return jax.lax.conv_general_dilated(
        x, w, (stride, stride), [(pad, pad), (pad, pad)],
        dimension_numbers=("NCHW", "OIHW", "NCHW"))


def _ref_bn(x, bn):
    gamma, beta, mean, var = bn
    g = gamma.reshape(1, -1, 1, 1)
    b = beta.reshape(1, -1, 1, 1)
    m = mean.reshape(1, -1, 1, 1)
    v = var.reshape(1, -1, 1, 1)
    return g * (x - m) / jnp.sqrt(v + _BN_EPS) + b


def ref_forward(x, params, stride):
    Cin = x.shape[1]
    Cout = params["w3"].shape[0]
    out = jax.nn.relu(_ref_bn(_ref_conv(x, params["w1"]), params["bn1"]))
    out = jax.nn.relu(_ref_bn(_ref_conv(out, params["w2"], stride, 1),
                              params["bn2"]))
    out = _ref_bn(_ref_conv(out, params["w3"]), params["bn3"])
    if stride != 1 or Cin != Cout:
        sc = _ref_bn(_ref_conv(x, params["w_sc"], stride), params["bn_sc"])
    else:
        sc = x
    return jax.nn.relu(out + sc)


# ----------------------------------------------------------------------------
# Deterministic parameter init (synthetic weights, module __init__ shapes)
# ----------------------------------------------------------------------------
def init_params(key, in_planes, planes, stride, expansion=4):
    out_planes = expansion * planes
    ks = jax.random.split(key, 16)

    def conv_w(k, o, i, kh, kw):
        fan_in = i * kh * kw
        return jax.random.normal(k, (o, i, kh, kw), jnp.float32) / jnp.sqrt(fan_in)

    def bn(k, c):
        k1, k2, k3, k4 = jax.random.split(k, 4)
        gamma = 1.0 + 0.1 * jax.random.normal(k1, (c,), jnp.float32)
        beta = 0.1 * jax.random.normal(k2, (c,), jnp.float32)
        mean = 0.1 * jax.random.normal(k3, (c,), jnp.float32)
        var = 1.0 + 0.1 * jax.random.uniform(k4, (c,), jnp.float32)
        return (gamma, beta, mean, var)

    params = {
        "w1": conv_w(ks[0], planes, in_planes, 1, 1),
        "bn1": bn(ks[1], planes),
        "w2": conv_w(ks[2], planes, planes, 3, 3),
        "bn2": bn(ks[3], planes),
        "w3": conv_w(ks[4], out_planes, planes, 1, 1),
        "bn3": bn(ks[5], out_planes),
    }
    if stride != 1 or in_planes != out_planes:
        params["w_sc"] = conv_w(ks[6], out_planes, in_planes, 1, 1)
        params["bn_sc"] = bn(ks[7], out_planes)
    return params


# ----------------------------------------------------------------------------
if __name__ == "__main__":
    # TODO(synk): BatchNorm is implemented in inference mode (running stats
    # folded into scale/bias); training-mode batch-statistics update is not
    # reproduced.
    key = jax.random.PRNGKey(0)

    def run_case(batch, in_planes, planes, spatial, stride, k):
        k_x, k_p = jax.random.split(k)
        x = jax.random.normal(k_x, (batch, in_planes, spatial, spatial),
                              jnp.float32)
        params = init_params(k_p, in_planes, planes, stride)
        out = jax.block_until_ready(bottleneck_forward(x, params, stride))
        ref = jax.block_until_ready(ref_forward(x, params, stride))
        assert out.shape == ref.shape
        err = jnp.max(jnp.abs(out - ref))
        rel = err / (jnp.max(jnp.abs(ref)) + 1e-6)
        assert rel < 5e-2, f"stride={stride}: max abs err {err}, rel {rel}"

    k1, k2 = jax.random.split(key)
    # stride=1: fused direct 3x3 kernel + projection shortcut (16 != 4*8)
    run_case(2, 16, 8, 8, 1, k1)
    # stride=2: im2col fallback path + strided projection shortcut
    run_case(2, 16, 8, 8, 2, k2)

    print("KERNEL_OK")
</pallas_src>

<mosaic_0001>
module attributes {stable_mosaic.version = 11 : i64} {
  func.func @_matmul_kernel(%arg0: i32, %arg1: i32, %arg2: i32, %arg3: memref<64x128xbf16, #tpu.memory_space<vmem>>, %arg4: memref<128x128xbf16, #tpu.memory_space<vmem>>, %arg5: memref<1x128xf32, #tpu.memory_space<vmem>>, %arg6: memref<64x128xbf16, #tpu.memory_space<vmem>>, %arg7: memref<64x128xf32, #tpu.memory_space<vmem>>) attributes {dimension_semantics = [#tpu.dimension_semantics<parallel>, #tpu.dimension_semantics<parallel>, #tpu.dimension_semantics<arbitrary>], iteration_bounds = array<i64: 2, 1, 1>, scalar_prefetch = 0 : i64, scratch_operands = 1 : i64, tpu.core_type = #tpu.core_type<tc>, window_params = [{transform_indices = @transform_0, window_bounds = array<i64: 64, 128>}, {transform_indices = @transform_1, window_bounds = array<i64: 128, 128>}, {transform_indices = @transform_2, window_bounds = array<i64: 1, 128>}, {transform_indices = @transform_3, window_bounds = array<i64: 64, 128>}]} {
    %c0_i32 = arith.constant 0 : i32
    %0 = arith.cmpi eq, %arg2, %c0_i32 : i32
    %1 = arith.extui %0 : i1 to i32
    %c0_i32_0 = arith.constant 0 : i32
    %2 = arith.cmpi ne, %1, %c0_i32_0 : i32
    scf.if %2 {
      %cst_10 = arith.constant 0.000000e+00 : f32
      %12 = vector.broadcast %cst_10 : f32 to vector<64x128xf32>
      %c0_11 = arith.constant 0 : index
      %c0_12 = arith.constant 0 : index
      %13 = vector.load %arg7[%c0_11, %c0_12] : memref<64x128xf32, #tpu.memory_space<vmem>>, vector<64x128xf32>
      tpu.vector_store %arg7[%c0_11, %c0_12], %12 {strides = array<i32>} : memref<64x128xf32, #tpu.memory_space<vmem>>, vector<64x128xf32>,
    } else {
    }
    %c0 = arith.constant 0 : index
    %c0_1 = arith.constant 0 : index
    %3 = vector.load %arg7[%c0, %c0_1] : memref<64x128xf32, #tpu.memory_space<vmem>>, vector<64x128xf32>
    %c0_2 = arith.constant 0 : index
    %c0_3 = arith.constant 0 : index
    %4 = vector.load %arg3[%c0_2, %c0_3] : memref<64x128xbf16, #tpu.memory_space<vmem>>, vector<64x128xbf16>
    %c0_4 = arith.constant 0 : index
    %c0_5 = arith.constant 0 : index
    %5 = vector.load %arg4[%c0_4, %c0_5] : memref<128x128xbf16, #tpu.memory_space<vmem>>, vector<128x128xbf16>
    %cst = arith.constant dense<0.000000e+00> : vector<64x128xf32>
    %6 = tpu.matmul %4, %5, %cst {dimension_numbers = #tpu.dot_dimension_numbers<[1], [0], [0], [1], [0, 0, 1, 1], [], []>} : vector<64x128xbf16>, vector<128x128xbf16>, vector<64x128xf32> -> vector<64x128xf32>
    %7 = arith.addf %3, %6 : vector<64x128xf32>
    %c0_6 = arith.constant 0 : index
    %c0_7 = arith.constant 0 : index
    %8 = vector.load %arg7[%c0_6, %c0_7] : memref<64x128xf32, #tpu.memory_space<vmem>>, vector<64x128xf32>
    tpu.vector_store %arg7[%c0_6, %c0_7], %7 {strides = array<i32>} : memref<64x128xf32, #tpu.memory_space<vmem>>, vector<64x128xf32>,
    %c0_i32_8 = arith.constant 0 : i32
    %9 = arith.cmpi eq, %arg2, %c0_i32_8 : i32
    %10 = arith.extui %9 : i1 to i32
    %c0_i32_9 = arith.constant 0 : i32
    %11 = arith.cmpi ne, %10, %c0_i32_9 : i32
    scf.if %11 {
      %c0_10 = arith.constant 0 : index
      %c0_11 = arith.constant 0 : index
      %12 = vector.load %arg7[%c0_10, %c0_11] : memref<64x128xf32, #tpu.memory_space<vmem>>, vector<64x128xf32>
      %c0_12 = arith.constant 0 : index
      %c0_13 = arith.constant 0 : index
      %13 = vector.load %arg5[%c0_12, %c0_13] : memref<1x128xf32, #tpu.memory_space<vmem>>, vector<1x128xf32>
      %14 = vector.broadcast %13 : vector<1x128xf32> to vector<64x128xf32>
      %15 = arith.addf %12, %14 : vector<64x128xf32>
      %cst_14 = arith.constant 0.000000e+00 : f32
      %16 = vector.broadcast %cst_14 : f32 to vector<64x128xf32>
      %17 = arith.maximumf %15, %16 : vector<64x128xf32>
      %18 = arith.truncf %17 : vector<64x128xf32> to vector<64x128xbf16>
      %c0_15 = arith.constant 0 : index
      %c0_16 = arith.constant 0 : index
      %19 = vector.load %arg6[%c0_15, %c0_16] : memref<64x128xbf16, #tpu.memory_space<vmem>>, vector<64x128xbf16>
      tpu.vector_store %arg6[%c0_15, %c0_16], %18 {strides = array<i32>} : memref<64x128xbf16, #tpu.memory_space<vmem>>, vector<64x128xbf16>,
    } else {
    }
    return
  }
  func.func @transform_0(%arg0: i32, %arg1: i32, %arg2: i32) -> (i32, i32) {
    %c0_i32 = arith.constant 0 : i32
    return %arg0, %arg2 : i32, i32
  }
  func.func @transform_1(%arg0: i32, %arg1: i32, %arg2: i32) -> (i32, i32) {
    %c0_i32 = arith.constant 0 : i32
    return %arg2, %arg1 : i32, i32
  }
  func.func @transform_2(%arg0: i32, %arg1: i32, %arg2: i32) -> (i32, i32) {
    %c0_i32 = arith.constant 0 : i32
    %c0_i32_0 = arith.constant 0 : i32
    return %c0_i32, %arg1 : i32, i32
  }
  func.func @transform_3(%arg0: i32, %arg1: i32, %arg2: i32) -> (i32, i32) {
    %c0_i32 = arith.constant 0 : i32
    return %arg0, %arg1 : i32, i32
  }
}

</mosaic_0001>

<llo_original>
// kernel: tpu_custom_call.1
$region0: #{tpu_custom_call.1}
  #allocation0 [shape = 'u32[]', space=smem, size = 0x4, offset = 0x4, fixed_abs, tag = 'smem constant byte address 0x4 - core index']
  #allocation1 [shape = 'u32[144,128]{1,0:T(1,128)}', space=vmem, size = 0x12000, scoped, tag = 'internal scratch']
  #allocation2 [shape = 'f32[64,128]{1,0:T(8,128)}', space=vmem, size = 0x8000, scoped, tag = 'scratch operand']
  %s0 = inlined_call_operand.hbm [shape: bf16[128,128], index: 0, kind: input, shape index: {}]
  %s1 = inlined_call_operand.hbm [shape: bf16[128,128], index: 1, kind: input, shape index: {}]
  %s2 = inlined_call_operand.vmem [shape: f32[1,128], index: 2, kind: input, shape index: {}]
  %s3 = inlined_call_operand.hbm [shape: bf16[128,128], index: 3, kind: output, shape index: {}]
  %s4 = sld [smem:[#allocation0]]
  $region61: #{tpu_custom_call.1} parent=0
    _
  %s6 = ssub.s32 1, %s4
  %s7 = scalar_select 0, %s6, %s4
  $region1: #{tpu_custom_call.1} parent=0
    #allocation3 [shape = 'u8[32768]{0}', space=vmem, size = 0x8000, scoped, tag = 'input window, operand 0']
    #allocation4 [shape = 's32[2]{0}', space=sflag, size = 0x8, scoped, tag = 'scoped memory for tpu_custom_call.1']
    #allocation5 [shape = 's32[2]{0}', space=sflag, size = 0x8, scoped, tag = 'scoped memory for tpu_custom_call.1']
    #allocation6 [shape = 'u8[32768]{0}', space=vmem, size = 0x8000, scoped, tag = 'input window, operand 1, single buffered']
    #allocation7 [shape = 's32[1]{0}', space=sflag, size = 0x4, scoped, tag = 'scoped memory for tpu_custom_call.1']
    #allocation8 [shape = 'u8[32768]{0}', space=vmem, size = 0x8000, scoped, tag = 'output window, operand 0']
    %8 = vsyncpa [#allocation4], 0
    %s9 = scalar_lea.sflag [#allocation4], 1
    %10 = vsyncpa %s9, 0
    %11 = vsyncpa [#allocation7], 0
    %12 = vsyncpa [#allocation5], 0
    %s13 = scalar_lea.sflag [#allocation5], 1
    %14 = vsyncpa %s13, 0
    loop: start=0, step=1, limit=4
    $region2: #{tpu_custom_call.1} parent=1 // loop_pre_header
      _
    $region3: #{tpu_custom_call.1} parent=1 // loop_header
      %s16 = sphi 0, %s20
      %p17 = scmp.ge.s32.totalorder %s16, 4
      %s23 = sphi 0, %s42
      %s24 = sphi 0, %s38
      %s25 = sphi 0, %s34
      %s26 = sphi 0, %s23
      %s27 = sphi 0, %s24
      %s28 = sphi 0, %s25
      %s29 = sphi 0, %s26
      %s30 = sphi 0, %s27
      %s31 = sphi 0, %s28
      %s47 = sphi 0, %s49
      %s50 = sphi 0, %s47
      %s51 = sphi 0, %s50
      %s67 = sphi 0, %s51
      %s75 = sphi 0, %s77
      %s78 = sphi 0, %s75
      %s79 = sphi 0, %s78
      %s95 = sphi 0, %s79
      %s101 = sphi 0, %s103
      %s104 = sphi 0, %s101
      %s105 = sphi 0, %s104
      %s121 = sphi 0, %s105
      %s129 = sphi 0, %s131
      %s132 = sphi 0, %s129
      %s133 = sphi 0, %s132
      %s149 = sphi 0, %s133
    $region4: #{tpu_custom_call.1} parent=1 // loop_header_branch
      %19 = sbr.rel (%p17) target = $region8
    $region5: #{tpu_custom_call.1} parent=1 // loop_body
      %s21 = ssub.s32 %s16, 1
      %s22 = ssub.s32 %s16, 2
      %s32 = sadd.s32 1, %s25
      %p33 = scmp.ge.s32.totalorder %s32, 1
      %s34 = scalar_select %p33, 0, %s32
      %s35 = sadd.s32 1, %s24
      %s36 = scalar_select %p33, %s35, %s24
      %p37 = scmp.ge.s32.totalorder %s36, 1
      %s38 = scalar_select %p37, 0, %s36
      %s39 = sadd.s32 1, %s23
      %s40 = scalar_select %p37, %s39, %s23
      %p41 = scmp.ge.s32.totalorder %s40, 2
      %s42 = scalar_select %p41, 0, %s40
      %s43 = ssub.s32 %s23, %s42
      %s44 = ssub.s32 %s25, %s34
      %s45 = sor.u32 %s43, %s44
      %p46 = scmp.eq.s32.totalorder %s45, 0
      %s48 = sadd.s32 %s47, 1
      %s49 = scalar_select %p46, %s47, %s48
      %p52 = pneg %p46
      %p53 = scmp.eq.s32.totalorder %s16, 1
      %p54 = por %p52, %p53
      %p55 = scmp.ne.s32.totalorder %s47, %s50
      %p56 = scmp.eq.s32.totalorder %s16, 0
      %p57 = por %p55, %p56
      %p58 = scmp.ne.s32.totalorder %s47, %s50
      %p59 = scmp.eq.s32.totalorder %s21, 1
      %p60 = por %p58, %p59
      %p61 = scmp.ne.s32.totalorder %s50, %s51
      %p62 = scmp.eq.s32.totalorder %s21, 0
      %p63 = por %p61, %p62
      %p64 = scmp.ne.s32.totalorder %s50, %s51
      %p65 = scmp.eq.s32.totalorder %s22, 1
      %p66 = por %p64, %p65
      %p68 = scmp.ne.s32.totalorder %s51, %s67
      %p69 = scmp.eq.s32.totalorder %s22, 0
      %p70 = por %p68, %p69
      %s71 = ssub.s32 %s25, %s34
      %s72 = ssub.s32 %s24, %s38
      %s73 = sor.u32 %s71, %s72
      %p74 = scmp.eq.s32.totalorder %s73, 0
      %s76 = sadd.s32 %s75, 1
      %s77 = scalar_select %p74, %s75, %s76
      %p80 = pneg %p74
      %p81 = scmp.eq.s32.totalorder %s16, 1
      %p82 = por %p80, %p81
      %p83 = scmp.ne.s32.totalorder %s75, %s78
      %p84 = scmp.eq.s32.totalorder %s16, 0
      %p85 = por %p83, %p84
      %p86 = scmp.ne.s32.totalorder %s75, %s78
      %p87 = scmp.eq.s32.totalorder %s21, 1
      %p88 = por %p86, %p87
      %p89 = scmp.ne.s32.totalorder %s78, %s79
      %p90 = scmp.eq.s32.totalorder %s21, 0
      %p91 = por %p89, %p90
      %p92 = scmp.ne.s32.totalorder %s78, %s79
      %p93 = scmp.eq.s32.totalorder %s22, 1
      %p94 = por %p92, %p93
      %p96 = scmp.ne.s32.totalorder %s79, %s95
      %p97 = scmp.eq.s32.totalorder %s22, 0
      %p98 = por %p96, %p97
      %s99 = ssub.s32 %s24, %s38
      %p100 = scmp.eq.s32.totalorder %s99, 0
      %s102 = sadd.s32 %s101, 1
      %s103 = scalar_select %p100, %s101, %s102
      %p106 = pneg %p100
      %p107 = scmp.eq.s32.totalorder %s16, 1
      %p108 = por %p106, %p107
      %p109 = scmp.ne.s32.totalorder %s101, %s104
      %p110 = scmp.eq.s32.totalorder %s16, 0
      %p111 = por %p109, %p110
      %p112 = scmp.ne.s32.totalorder %s101, %s104
      %p113 = scmp.eq.s32.totalorder %s21, 1
      %p114 = por %p112, %p113
      %p115 = scmp.ne.s32.totalorder %s104, %s105
      %p116 = scmp.eq.s32.totalorder %s21, 0
      %p117 = por %p115, %p116
      %p118 = scmp.ne.s32.totalorder %s104, %s105
      %p119 = scmp.eq.s32.totalorder %s22, 1
      %p120 = por %p118, %p119
      %p122 = scmp.ne.s32.totalorder %s105, %s121
      %p123 = scmp.eq.s32.totalorder %s22, 0
      %p124 = por %p122, %p123
      %s125 = ssub.s32 %s23, %s42
      %s126 = ssub.s32 %s24, %s38
      %s127 = sor.u32 %s125, %s126
      %p128 = scmp.eq.s32.totalorder %s127, 0
      %s130 = sadd.s32 %s129, 1
      %s131 = scalar_select %p128, %s129, %s130
      %p134 = pneg %p128
      %p135 = scmp.eq.s32.totalorder %s16, 1
      %p136 = por %p134, %p135
      %p137 = scmp.ne.s32.totalorder %s129, %s132
      %p138 = scmp.eq.s32.totalorder %s16, 0
      %p139 = por %p137, %p138
      %p140 = scmp.ne.s32.totalorder %s129, %s132
      %p141 = scmp.eq.s32.totalorder %s21, 1
      %p142 = por %p140, %p141
      %p143 = scmp.ne.s32.totalorder %s132, %s133
      %p144 = scmp.eq.s32.totalorder %s21, 0
      %p145 = por %p143, %p144
      %p146 = scmp.ne.s32.totalorder %s132, %s133
      %p147 = scmp.eq.s32.totalorder %s22, 1
      %p148 = por %p146, %p147
      %p150 = scmp.ne.s32.totalorder %s133, %s149
      %p151 = scmp.eq.s32.totalorder %s22, 0
      %p152 = por %p150, %p151
      %p153 = scmp.le.s32.totalorder 1, %s16
      %p154 = scmp.lt.s32.totalorder %s16, 3
      %p155 = pnand %p153, %p154
      %p156 = pneg %p155
      // Predicated region
      $region9: #{tpu_custom_call.1} parent=5 // pred_check
        _
      $region10: #{tpu_custom_call.1} parent=5 // pred_check_branch
        %158 = sbr.rel (%p155) target = $region12
      $region11: #{tpu_custom_call.1} parent=5 // pred_region
        %s159 = ssub.s32 %s16, 1
        // Predicated region
        $region13: #{tpu_custom_call.1} parent=11 // pred_check
          %p160 = pneg %p91
        $region14: #{tpu_custom_call.1} parent=11 // pred_check_branch
          %162 = sbr.rel (%p160) target = $region16
        $region15: #{tpu_custom_call.1} parent=11 // pred_region
          %s163 = smul.u32 16, %s28
          %s165 = ssub.s32 1024, 1024
          %166 = vsyncadd [#allocation7], %s165
          %s167 = sadd.s32 %s27, %s163
          %s168 = smul.addr %s167, 64
          %s169 = scalar_lea.hbm %s1, %s168
          %s170 = sshll.u32 [#allocation6], 4
          %s171 = int_to_ptr.vmem [resolvable:$true] %s170
          %176 = dma.hbm_to_vmem [thread:$0]  %s169, 1024, %s171, [#allocation7], 64, 64, 4
        $region16: #{tpu_custom_call.1} parent=11 // pred_fallthru
          _
        // Predicated region
        $region17: #{tpu_custom_call.1} parent=11 // pred_check
          %p177 = pneg %p117
        $region18: #{tpu_custom_call.1} parent=11 // pred_check_branch
          %179 = sbr.rel (%p177) target = $region20
        $region19: #{tpu_custom_call.1} parent=11 // pred_region
          %p180 = scmp.lt.s32.totalorder %s27, 0
          %s181 = scalar_select %p180, %s27, 0
          %s182 = scalar_lea.vmem %s2, %s181
        $region20: #{tpu_custom_call.1} parent=11 // pred_fallthru
          _
      $region12: #{tpu_custom_call.1} parent=5 // pred_fallthru
        _
      %p183 = scmp.lt.s32.totalorder %s16, 2
      // Predicated region
      $region21: #{tpu_custom_call.1} parent=5 // pred_check
        %p184 = pneg %p183
      $region22: #{tpu_custom_call.1} parent=5 // pred_check_branch
        %186 = sbr.rel (%p184) target = $region24
      $region23: #{tpu_custom_call.1} parent=5 // pred_region
        // Predicated region
        $region25: #{tpu_custom_call.1} parent=23 // pred_check
          %p187 = pneg %p57
        $region26: #{tpu_custom_call.1} parent=23 // pred_check_branch
          %189 = sbr.rel (%p187) target = $region28
        $region27: #{tpu_custom_call.1} parent=23 // pred_region
          %s190 = sand.u32 %s47, 1
          %s191 = scalar_lea.sflag [#allocation4], %s190
          %s192 = sand.u32 %s47, 1
          %s193 = smul.addr %s192, 32
          %s194 = scalar_lea.vmem [#allocation3], %s193
          %s195 = smul.u32 8, %s23
          %s197 = ssub.s32 512, 512
          %198 = vsyncadd %s191, %s197
          %s199 = sadd.s32 %s25, %s195
          %s200 = smul.addr %s199, 64
          %s201 = scalar_lea.hbm %s0, %s200
          %s202 = sshll.u32 %s194, 4
          %s203 = int_to_ptr.vmem [resolvable:$true] %s202
          %208 = dma.hbm_to_vmem [thread:$0]  %s201, 512, %s203, %s191, 64, 64, 4
        $region28: #{tpu_custom_call.1} parent=23 // pred_fallthru
          _
      $region24: #{tpu_custom_call.1} parent=5 // pred_fallthru
        _
      %p209 = scmp.le.s32.totalorder 1, %s16
      %p210 = scmp.lt.s32.totalorder %s16, 3
      %p211 = pnand %p209, %p210
      %p212 = pneg %p211
      // Predicated region
      $region29: #{tpu_custom_call.1} parent=5 // pred_check
        _
      $region30: #{tpu_custom_call.1} parent=5 // pred_check_branch
        %214 = sbr.rel (%p211) target = $region32
      $region31: #{tpu_custom_call.1} parent=5 // pred_region
        %s215 = ssub.s32 %s16, 1
        %s216 = sand.u32 %s50, 1
        %s217 = scalar_lea.sflag [#allocation4], %s216
        %s218 = sand.u32 %s50, 1
        %s219 = smul.addr %s218, 32
        %s220 = scalar_lea.vmem [#allocation3], %s219
        // Predicated region
        $region33: #{tpu_custom_call.1} parent=31 // pred_check
          %p221 = pneg %p63
        $region34: #{tpu_custom_call.1} parent=31 // pred_check_branch
          %223 = sbr.rel (%p221) target = $region36
        $region35: #{tpu_custom_call.1} parent=31 // pred_region
          %224 = dma.done %s217, 512
        $region36: #{tpu_custom_call.1} parent=31 // pred_fallthru
          _
        // Predicated region
        $region37: #{tpu_custom_call.1} parent=31 // pred_check
          %p225 = pneg %p91
        $region38: #{tpu_custom_call.1} parent=31 // pred_check_branch
          %227 = sbr.rel (%p225) target = $region40
        $region39: #{tpu_custom_call.1} parent=31 // pred_region
          %228 = dma.done [#allocation7], 1024
        $region40: #{tpu_custom_call.1} parent=31 // pred_fallthru
          _
        %s229 = sand.u32 %s50, 1
        %s230 = scalar_lea.sflag [#allocation4], %s229
        %s231 = sand.u32 %s50, 1
        %s232 = smul.addr %s231, 32
        %s233 = scalar_lea.vmem [#allocation3], %s232
        %p234 = pneg %p63
        %p235 = pneg %p60
        %p236 = pneg %p91
        %p237 = pneg %p88
        %p238 = scmp.lt.s32.totalorder %s27, 0
        %s239 = scalar_select %p238, %s27, 0
        %s240 = scalar_lea.vmem %s2, %s239
        %p241 = pneg %p117
        %p242 = pneg %p114
        %p243 = pneg %p145
        %p244 = pneg %p142
        %s245 = sand.u32 %s132, 1
        %s246 = scalar_lea.sflag [#allocation5], %s245
        %s247 = sand.u32 %s132, 1
        %s248 = smul.addr %s247, 32
        %s249 = scalar_lea.vmem [#allocation8], %s248
        %s250 = smul.u32 8, %s26
        %s251 = smul.u32 16, %s28
        %p252 = scmp.lt.s32.totalorder %s27, 0
        %s253 = scalar_select %p252, %s27, 0
        %s254 = scalar_lea.vmem %s2, %s253
        %s255 = smul.u32 8, %s26
        %p257 = scmp.eq.s32.totalorder %s28, 0
        // Predicated region
        $region41: #{tpu_custom_call.1} parent=31 // pred_check
          %p258 = pneg %p257
        $region42: #{tpu_custom_call.1} parent=31 // pred_check_branch
          %260 = sbr.rel (%p258) target = $region44
        $region43: #{tpu_custom_call.1} parent=31 // pred_region
          %261 = vst [vmem:[#allocation2] sm:$0xff] 0.0
          %262 = vst [vmem:[#allocation2 + $0x8] sm:$0xff] 0.0
          %263 = vst [vmem:[#allocation2 + $0x10] sm:$0xff] 0.0
          %264 = vst [vmem:[#allocation2 + $0x18] sm:$0xff] 0.0
          %265 = vst [vmem:[#allocation2 + $0x20] sm:$0xff] 0.0
          %266 = vst [vmem:[#allocation2 + $0x28] sm:$0xff] 0.0
          %267 = vst [vmem:[#allocation2 + $0x30] sm:$0xff] 0.0
          %268 = vst [vmem:[#allocation2 + $0x38] sm:$0xff] 0.0
        $region44: #{tpu_custom_call.1} parent=31 // pred_fallthru
          _
        %v269 = vld [vmem:[#allocation2] sm:$0xff]
        %v270 = vld [vmem:[#allocation2 + $0x8] sm:$0xff]
        %v271 = vld [vmem:[#allocation2 + $0x10] sm:$0xff]
        %v272 = vld [vmem:[#allocation2 + $0x18] sm:$0xff]
        %v273 = vld [vmem:[#allocation2 + $0x20] sm:$0xff]
        %v274 = vld [vmem:[#allocation2 + $0x28] sm:$0xff]
        %v275 = vld [vmem:[#allocation2 + $0x30] sm:$0xff]
        %v276 = vld [vmem:[#allocation2 + $0x38] sm:$0xff]
        %v277 = vld [vmem:[%s220] sm:$0xf]
        %v278 = vld [vmem:[%s220 + $0x4] sm:$0xf]
        %v279 = vld [vmem:[%s220 + $0x8] sm:$0xf]
        %v280 = vld [vmem:[%s220 + $0xc] sm:$0xf]
        %v281 = vld [vmem:[%s220 + $0x10] sm:$0xf]
        %v282 = vld [vmem:[%s220 + $0x14] sm:$0xf]
        %v283 = vld [vmem:[%s220 + $0x18] sm:$0xf]
        %v284 = vld [vmem:[%s220 + $0x1c] sm:$0xf]
        %v285 = vld [vmem:[#allocation6] sm:$0xf]
        %v286 = vld [vmem:[#allocation6 + $0x4] sm:$0xf]
        %v287 = vld [vmem:[#allocation6 + $0x8] sm:$0xf]
        %v288 = vld [vmem:[#allocation6 + $0xc] sm:$0xf]
        %v289 = vld [vmem:[#allocation6 + $0x10] sm:$0xf]
        %v290 = vld [vmem:[#allocation6 + $0x14] sm:$0xf]
        %v291 = vld [vmem:[#allocation6 + $0x18] sm:$0xf]
        %v292 = vld [vmem:[#allocation6 + $0x1c] sm:$0xf]
        %v293 = vld [vmem:[#allocation6 + $0x20] sm:$0xf]
        %v294 = vld [vmem:[#allocation6 + $0x24] sm:$0xf]
        %v295 = vld [vmem:[#allocation6 + $0x28] sm:$0xf]
        %v296 = vld [vmem:[#allocation6 + $0x2c] sm:$0xf]
        %v297 = vld [vmem:[#allocation6 + $0x30] sm:$0xf]
        %v298 = vld [vmem:[#allocation6 + $0x34] sm:$0xf]
        %v299 = vld [vmem:[#allocation6 + $0x38] sm:$0xf]
        %v300 = vld [vmem:[#allocation6 + $0x3c] sm:$0xf]
        %v309 = vunpack.c.l.b16 %v277
        %v310 = vunpack.c.l.b16 %v278
        %v311 = vunpack.c.l.b16 %v279
        %v312 = vunpack.c.l.b16 %v280
        %v313 = vunpack.c.l.b16 %v281
        %v314 = vunpack.c.l.b16 %v282
        %v315 = vunpack.c.l.b16 %v283
        %v316 = vunpack.c.l.b16 %v284
        %v317 = vpack.c.b16 %v310, %v309
        %v318 = vpack.c.b16 %v312, %v311
        %v319 = vpack.c.b16 %v314, %v313
        %v320 = vpack.c.b16 %v316, %v315
        %v341 = vunpack.c.l.b16 %v285
        %v342 = vunpack.c.l.b16 %v286
        %v343 = vunpack.c.l.b16 %v287
        %v344 = vunpack.c.l.b16 %v288
        %v345 = vunpack.c.l.b16 %v289
        %v346 = vunpack.c.l.b16 %v290
        %v347 = vunpack.c.l.b16 %v291
        %v348 = vunpack.c.l.b16 %v292
        %v349 = vunpack.c.l.b16 %v293
        %v350 = vunpack.c.l.b16 %v294
        %v351 = vunpack.c.l.b16 %v295
        %v352 = vunpack.c.l.b16 %v296
        %v353 = vunpack.c.l.b16 %v297
        %v354 = vunpack.c.l.b16 %v298
        %v355 = vunpack.c.l.b16 %v299
        %v356 = vunpack.c.l.b16 %v300
        %v357 = vpack.c.b16 %v342, %v341
        %v358 = vpack.c.b16 %v344, %v343
        %v359 = vpack.c.b16 %v346, %v345
        %v360 = vpack.c.b16 %v348, %v347
        %v361 = vpack.c.b16 %v350, %v349
        %v362 = vpack.c.b16 %v352, %v351
        %v363 = vpack.c.b16 %v354, %v353
        %v364 = vpack.c.b16 %v356, %v355
        %373 = vmatprep.subr.bf16.mxu0 0
        %374 = vmatpush1.bf16.msra.mxu0 %v364
        %375 = vmatprep.subr.bf16.mxu0 0
        %376 = vmatpush1.bf16.msra.mxu0 %v363
        %377 = vmatprep.subr.bf16.mxu0 0
        %378 = vmatpush1.bf16.msra.mxu0 %v362
        %379 = vmatprep.subr.bf16.mxu0 0
        %380 = vmatpush1.bf16.msra.mxu0 %v361
        %381 = vmatprep.subr.bf16.mxu0 0
        %382 = vmatpush1.bf16.msra.mxu0 %v360
        %383 = vmatprep.subr.bf16.mxu0 0
        %384 = vmatpush1.bf16.msra.mxu0 %v359
        %385 = vmatprep.subr.bf16.mxu0 0
        %386 = vmatpush1.bf16.msra.mxu0 %v358
        %387 = vmatprep.subr.bf16.mxu0 0
        %388 = vmatpush1.bf16.msra.mxu0 %v357
        %389 = vmatprep.subr.bf16.mxu0 0
        %390 = vmatpush2.bf16.msra.mxu0 0
        %391 = vmatprep.subr.bf16.mxu0 0
        %392 = vmatpush2.bf16.msra.mxu0 0
        %393 = vmatprep.subr.bf16.mxu0 0
        %394 = vmatpush2.bf16.msra.mxu0 0
        %395 = vmatprep.subr.bf16.mxu0 0
        %396 = vmatpush2.bf16.msra.mxu0 0
        %397 = vmatprep.subr.bf16.mxu0 0
        %398 = vmatpush2.bf16.msra.mxu0 0
        %399 = vmatprep.subr.bf16.mxu0 0
        %400 = vmatpush2.bf16.msra.mxu0 0
        %401 = vmatprep.subr.bf16.mxu0 0
        %402 = vmatpush2.bf16.msra.mxu0 0
        %403 = vmatprep.subr.bf16.mxu0 0
        %404 = vmatpush2.bf16.msra.mxu0 0
        %405 = vmatprep.mubr.bf16.mxu0 0
        %406 = vmatmul.mubr.bf16.gmra.mxu0 %v317
        %v407 = vpop.f32.mrf.mxu0
        %v408 = vadd.f32 0.0, %v407
        %v409 = vpop.f32.mrf.mxu0
        %v410 = vpop.f32.mrf.mxu0
        %v411 = vadd.f32 0.0, %v410
        %v412 = vpop.f32.mrf.mxu0
        %413 = vmatprep.mubr.bf16.mxu0 0
        %414 = vmatmul.mubr.bf16.gmra.mxu0 %v318
        %v415 = vpop.f32.mrf.mxu0
        %v416 = vadd.f32 0.0, %v415
        %v417 = vpop.f32.mrf.mxu0
        %v418 = vpop.f32.mrf.mxu0
        %v419 = vadd.f32 0.0, %v418
        %v420 = vpop.f32.mrf.mxu0
        %421 = vmatprep.mubr.bf16.mxu0 0
        %422 = vmatmul.mubr.bf16.gmra.mxu0 %v319
        %v423 = vpop.f32.mrf.mxu0
        %v424 = vadd.f32 0.0, %v423
        %v425 = vpop.f32.mrf.mxu0
        %v426 = vpop.f32.mrf.mxu0
        %v427 = vadd.f32 0.0, %v426
        %v428 = vpop.f32.mrf.mxu0
        %429 = vmatprep.mubr.bf16.mxu0 0
        %430 = vmatmul.mubr.bf16.gmra.mxu0 %v320
        %v431 = vpop.f32.mrf.mxu0
        %v432 = vadd.f32 0.0, %v431
        %v433 = vpop.f32.mrf.mxu0
        %v434 = vpop.f32.mrf.mxu0
        %v435 = vadd.f32 0.0, %v434
        %v436 = vpop.f32.mrf.mxu0
        %437 = vdwg.mxu0
        %v438 = vadd.f32 %v269, %v408
        %v439 = vadd.f32 %v270, %v411
        %v440 = vadd.f32 %v271, %v416
        %v441 = vadd.f32 %v272, %v419
        %v442 = vadd.f32 %v273, %v424
        %v443 = vadd.f32 %v274, %v427
        %v444 = vadd.f32 %v275, %v432
        %v445 = vadd.f32 %v276, %v435
        %446 = vst [vmem:[#allocation2] sm:$0xff] %v438
        %447 = vst [vmem:[#allocation2 + $0x8] sm:$0xff] %v439
        %448 = vst [vmem:[#allocation2 + $0x10] sm:$0xff] %v440
        %449 = vst [vmem:[#allocation2 + $0x18] sm:$0xff] %v441
        %450 = vst [vmem:[#allocation2 + $0x20] sm:$0xff] %v442
        %451 = vst [vmem:[#allocation2 + $0x28] sm:$0xff] %v443
        %452 = vst [vmem:[#allocation2 + $0x30] sm:$0xff] %v444
        %453 = vst [vmem:[#allocation2 + $0x38] sm:$0xff] %v445
        // Predicated region
        $region45: #{tpu_custom_call.1} parent=31 // pred_check
          %p454 = pneg %p257
        $region46: #{tpu_custom_call.1} parent=31 // pred_check_branch
          %456 = sbr.rel (%p454) target = $region48
        $region47: #{tpu_custom_call.1} parent=31 // pred_region
          %v457 = vld [vmem:[#allocation2] sm:$0xff]
          %v458 = vld [vmem:[#allocation2 + $0x8] sm:$0xff]
          %v459 = vld [vmem:[#allocation2 + $0x10] sm:$0xff]
          %v460 = vld [vmem:[#allocation2 + $0x18] sm:$0xff]
          %v461 = vld [vmem:[#allocation2 + $0x20] sm:$0xff]
          %v462 = vld [vmem:[#allocation2 + $0x28] sm:$0xff]
          %v463 = vld [vmem:[#allocation2 + $0x30] sm:$0xff]
          %v464 = vld [vmem:[#allocation2 + $0x38] sm:$0xff]
          %v465 = vld [vmem:[%s254] sm:$0x1]
          %v467 = vlaneseq
          %v468 = vshrl.u32 %v467, 7
          %v469 = vsub.s32 0, %v468
          %v470 = vrot.slane %v465, %v469
          %v472 = vadd.f32 %v457, %v470
          %v473 = vadd.f32 %v458, %v470
          %v474 = vadd.f32 %v459, %v470
          %v475 = vadd.f32 %v460, %v470
          %v476 = vadd.f32 %v461, %v470
          %v477 = vadd.f32 %v462, %v470
          %v478 = vadd.f32 %v463, %v470
          %v479 = vadd.f32 %v464, %v470
          %v480 = vmax.f32 %v472, 0.0
          %v481 = vmax.f32 %v473, 0.0
          %v482 = vmax.f32 %v474, 0.0
          %v483 = vmax.f32 %v475, 0.0
          %v484 = vmax.f32 %v476, 0.0
          %v485 = vmax.f32 %v477, 0.0
          %v486 = vmax.f32 %v478, 0.0
          %v487 = vmax.f32 %v479, 0.0
          %v488 = vpack.c.bf16 %v481, %v480
          %v489 = vpack.c.bf16 %v483, %v482
          %v490 = vpack.c.bf16 %v485, %v484
          %v491 = vpack.c.bf16 %v487, %v486
          %v496 = vunpack.c.l.b16 %v488
          %v497 = vunpack.c.h.b16 %v488
          %v498 = vunpack.c.l.b16 %v489
          %v499 = vunpack.c.h.b16 %v489
          %v500 = vunpack.c.l.b16 %v490
          %v501 = vunpack.c.h.b16 %v490
          %v502 = vunpack.c.l.b16 %v491
          %v503 = vunpack.c.h.b16 %v491
          %v504 = vpack.c.b16 %v496, %v496
          %v505 = vpack.c.b16 %v497, %v497
          %v506 = vpack.c.b16 %v498, %v498
          %v507 = vpack.c.b16 %v499, %v499
          %v508 = vpack.c.b16 %v500, %v500
          %v509 = vpack.c.b16 %v501, %v501
          %v510 = vpack.c.b16 %v502, %v502
          %v511 = vpack.c.b16 %v503, %v503
          %520 = vst [vmem:[%s249] sm:$0xf] %v504
          %521 = vst [vmem:[%s249 + $0x4] sm:$0xf] %v505
          %522 = vst [vmem:[%s249 + $0x8] sm:$0xf] %v506
          %523 = vst [vmem:[%s249 + $0xc] sm:$0xf] %v507
          %524 = vst [vmem:[%s249 + $0x10] sm:$0xf] %v508
          %525 = vst [vmem:[%s249 + $0x14] sm:$0xf] %v509
          %526 = vst [vmem:[%s249 + $0x18] sm:$0xf] %v510
          %527 = vst [vmem:[%s249 + $0x1c] sm:$0xf] %v511
        $region48: #{tpu_custom_call.1} parent=31 // pred_fallthru
          _
        %s528 = sand.u32 %s132, 1
        %s529 = scalar_lea.sflag [#allocation5], %s528
        %s530 = sand.u32 %s132, 1
        %s531 = smul.addr %s530, 32
        %s532 = scalar_lea.vmem [#allocation8], %s531
        // Predicated region
        $region49: #{tpu_custom_call.1} parent=31 // pred_check
          %p533 = pneg %p142
        $region50: #{tpu_custom_call.1} parent=31 // pred_check_branch
          %535 = sbr.rel (%p533) target = $region52
        $region51: #{tpu_custom_call.1} parent=31 // pred_region
          %s536 = smul.u32 8, %s26
          %s538 = ssub.s32 512, 512
          %539 = vsyncadd %s529, %s538
          %s540 = sadd.s32 %s27, %s536
          %s541 = smul.addr %s540, 64
          %s542 = scalar_lea.hbm %s3, %s541
          %s543 = sshll.u32 %s532, 4
          %s544 = int_to_ptr.vmem [resolvable:$true] %s543
          %549 = dma.vmem_to_hbm [thread:$0]  %s544, 512, %s542, %s529, 64, 64, 4
        $region52: #{tpu_custom_call.1} parent=31 // pred_fallthru
          _
      $region32: #{tpu_custom_call.1} parent=5 // pred_fallthru
        _
      %p550 = scmp.le.s32.totalorder 2, %s16
      // Predicated region
      $region53: #{tpu_custom_call.1} parent=5 // pred_check
        %p551 = pneg %p550
      $region54: #{tpu_custom_call.1} parent=5 // pred_check_branch
        %553 = sbr.rel (%p551) target = $region56
      $region55: #{tpu_custom_call.1} parent=5 // pred_region
        %s554 = ssub.s32 %s16, 2
        // Predicated region
        $region57: #{tpu_custom_call.1} parent=55 // pred_check
          %p555 = pneg %p148
        $region58: #{tpu_custom_call.1} parent=55 // pred_check_branch
          %557 = sbr.rel (%p555) target = $region60
        $region59: #{tpu_custom_call.1} parent=55 // pred_region
          %s558 = sand.u32 %s133, 1
          %s559 = scalar_lea.sflag [#allocation5], %s558
          %s560 = sand.u32 %s133, 1
          %s561 = smul.addr %s560, 32
          %s562 = scalar_lea.vmem [#allocation8], %s561
          %563 = dma.done %s559, 512
        $region60: #{tpu_custom_call.1} parent=55 // pred_fallthru
          _
      $region56: #{tpu_custom_call.1} parent=5 // pred_fallthru
        _
    $region6: #{tpu_custom_call.1} parent=1 // loop_footer
      %s20 = sadd.s32 1, %s16
    $region7: #{tpu_custom_call.1} parent=1 // loop_footer_branch
      %15 = sbr.rel target = $region3
    $region8: #{tpu_custom_call.1} parent=1 // loop_exit
      _
    %564 = vsyncpa [#allocation4], 1
    %s565 = scalar_lea.sflag [#allocation4], 1
    %566 = vsyncpa %s565, 1
    %567 = vsyncpa [#allocation7], 1
    %568 = vsyncpa [#allocation5], 1
    %s569 = scalar_lea.sflag [#allocation5], 1
    %570 = vsyncpa %s569, 1

</llo_original>
